<compile_context>
chip_gen: v7x
topology: tpu7x:2x2x1
jax: 0.10.0
libtpu: 0.0.40
codegen_flags: <defaults>
</compile_context>

<pallas_src>
import numpy as np
import jax
import jax.numpy as jnp
from jax.experimental import pallas as pl
from jax.experimental.pallas import tpu as pltpu


def _round_up(x: int, m: int) -> int:
    return ((x + m - 1) // m) * m


# ---------------------------------------------------------------------------
# Pallas kernel: segment mean via bf16 one-hot matmul, K-tiled over points
# ---------------------------------------------------------------------------
def _scatter_mean_kernel(idx_ref, feats_ref, out_ref, acc_ref):
    """Grid = (M tiles, K tiles).  Per step:
         idx_ref  : (1, tk)   int32  segment id of each point in this K tile
                               (-1 for padding points -> matches no segment)
         feats_ref: (tk, Cp)  bf16   features; last column is 1.0 (count col)
         out_ref  : (tm, Cp)  f32    segment means (written on last K step)
         acc_ref  : (tm, Cp)  f32    VMEM accumulator resident across K steps
    """
    k = pl.program_id(1)

    @pl.when(k == 0)
    def _():
        acc_ref[...] = jnp.zeros_like(acc_ref)

    tm = out_ref.shape[0]
    tk = idx_ref.shape[1]
    base = pl.program_id(0) * tm

    # one-hot assignment: onehot[m, n] = (segment(point n) == base + m)
    rows = jax.lax.broadcasted_iota(jnp.int32, (tm, tk), 0) + base
    onehot = (rows == idx_ref[...]).astype(jnp.bfloat16)          # (tm, tk)

    # segment partial sums (and counts, via the trailing ones column) on MXU
    acc_ref[...] += jnp.dot(onehot, feats_ref[...],
                            preferred_element_type=jnp.float32)   # (tm, Cp)

    @pl.when(k == pl.num_programs(1) - 1)
    def _():
        sums = acc_ref[...]
        counts = sums[:, -1:]                                      # (tm, 1)
        # torch.scatter_reduce('mean', include_self=True) on zeros: /(count+1)
        inv = pl.reciprocal(counts + 1.0, approx=True)
        out_ref[...] = (sums * inv).astype(out_ref.dtype)


def scatter_mean_pallas(feats, idx, num_segments, *, tm=128, tk=128):
    """Segment mean with torch.scatter_reduce('mean', include_self=True on a
    zero destination) semantics, computed inside a Pallas TPU kernel.

    tm: output-row tile (MXU-native 128; 256 is also a good choice on v6e/v7x).
    tk: point (reduction) tile; bounds VMEM use independently of N.
    """
    N, C = feats.shape
    c_pad = _round_up(C + 1, 128)          # +1 ones column; lane-dense stores
    m_pad = _round_up(max(int(num_segments), 1), tm)
    n_pad = _round_up(N, tk)

    # bf16 feats with a trailing ones column (counts fall out of the matmul);
    # padding rows are all-zero and their idx is -1, so they match no segment.
    feats_bf = jnp.zeros((n_pad, c_pad), jnp.bfloat16)
    feats_bf = feats_bf.at[:N, :C].set(feats.astype(jnp.bfloat16))
    feats_bf = feats_bf.at[:N, c_pad - 1].set(jnp.ones((N,), jnp.bfloat16))

    idx2d = jnp.full((1, n_pad), -1, dtype=jnp.int32)
    idx2d = idx2d.at[0, :N].set(idx.astype(jnp.int32))

    out = pl.pallas_call(
        _scatter_mean_kernel,
        out_shape=jax.ShapeDtypeStruct((m_pad, c_pad), jnp.float32),
        grid=(m_pad // tm, n_pad // tk),
        in_specs=[
            pl.BlockSpec((1, tk), lambda m, k: (0, k)),       # idx K tile
            pl.BlockSpec((tk, c_pad), lambda m, k: (k, 0)),   # feats K tile
        ],
        out_specs=pl.BlockSpec((tm, c_pad), lambda m, k: (m, 0)),
        scratch_shapes=[pltpu.VMEM((tm, c_pad), jnp.float32)],
        compiler_params=pltpu.CompilerParams(
            dimension_semantics=("parallel", "arbitrary")),
    )(idx2d, feats_bf)

    # TODO(synk): for production-scale N/M, replace the O(M*N*C) one-hot
    # matmul with an eager sort-by-segment + PrefetchScalarGridSpec carrying
    # per-segment offsets (HBM-roofline bound at O(N*C)).
    return out[:num_segments, :C].astype(feats.dtype)


# ---------------------------------------------------------------------------
# SparseDownsample forward (glue in plain JAX, hot path in Pallas)
# ---------------------------------------------------------------------------
def sparse_downsample(coords, feats, factor=2, resolution=None):
    """coords: (N, 1+DIM) int32 [batch, x, y, z]; feats: (N, C) float32.

    If `resolution` (the input grid resolution, known statically in TRELLIS)
    is given, MAX/OFFSET are computed host-side with no device->host sync.
    Returns (new_feats, new_coords, idx).
    """
    assert factor == 2
    DIM = coords.shape[-1] - 1

    coord = [coords[:, i] for i in range(DIM + 1)]
    for i in range(DIM):
        coord[i + 1] = coord[i + 1] // factor

    if resolution is not None:
        MAX = [resolution // factor] * DIM          # static: no host sync
    else:
        MAX = [int(jnp.max(coord[i + 1])) + 1 for i in range(DIM)]
    OFFSET = list(np.cumprod(np.array(MAX[::-1], dtype=np.int64)))[::-1] + [1]
    OFFSET = [int(o) for o in OFFSET]
    # NOTE: packed code is int32; batch_count * prod(MAX) must stay < 2**31.

    code = sum(c.astype(jnp.int32) * o for c, o in zip(coord, OFFSET))
    # jnp.unique needs concrete sizes (data-dependent M) -> stays eager.
    uniq, idx = jnp.unique(code, return_inverse=True)
    idx = idx.reshape(-1)
    M = int(uniq.shape[0])

    # hot path: scatter_reduce('mean') in the Pallas kernel
    new_feats = scatter_mean_pallas(feats, idx, M)

    new_coords = jnp.stack(
        [uniq // OFFSET[0]]
        + [(uniq // OFFSET[i + 1]) % MAX[i] for i in range(DIM)],
        axis=-1,
    ).astype(coords.dtype)

    # TODO(synk): SparseTensor bookkeeping (scale, spatial_cache,
    # register_spatial_cache) has no Pallas/JAX equivalent; we return
    # (new_feats, new_coords, idx) instead.
    return new_feats, new_coords, idx


# ---------------------------------------------------------------------------
if __name__ == "__main__":
    key = jax.random.PRNGKey(0)
    k_coords, k_feats, k_batch = jax.random.split(key, 3)

    N, C, DIM, RES, B = 128, 32, 3, 16, 2
    batch = jax.random.randint(k_batch, (N, 1), 0, B, dtype=jnp.int32)
    xyz = jax.random.randint(k_coords, (N, DIM), 0, RES, dtype=jnp.int32)
    coords = jnp.concatenate([batch, xyz], axis=-1)          # (N, 4) int32
    feats = jax.random.normal(k_feats, (N, C), dtype=jnp.float32)

    new_feats, new_coords, idx = sparse_downsample(coords, feats, factor=2,
                                                   resolution=RES)
    jax.block_until_ready(new_feats)
    jax.block_until_ready(new_coords)

    # Reference check (pure JAX, torch scatter_reduce 'mean' include_self=True
    # on a zero destination => divide by count+1).  The kernel rounds feats to
    # bf16 before the f32-accumulated matmul, so compare against the same
    # bf16-rounded feats; tolerance also covers the EUP approx reciprocal.
    M = new_feats.shape[0]
    feats_rounded = feats.astype(jnp.bfloat16).astype(jnp.float32)
    sums_ref = jax.ops.segment_sum(feats_rounded, idx, num_segments=M)
    counts_ref = jax.ops.segment_sum(jnp.ones((N, 1), jnp.float32), idx,
                                     num_segments=M)
    mean_ref = sums_ref / (counts_ref + 1.0)
    np.testing.assert_allclose(np.asarray(new_feats), np.asarray(mean_ref),
                               rtol=1e-2, atol=1e-2)

    # Downsampled coords must be exactly the unique set of [b, x//2, y//2, z//2]
    expect = np.asarray(coords).copy()
    expect[:, 1:] //= 2
    expect = np.unique(expect, axis=0)
    got = np.unique(np.asarray(new_coords), axis=0)
    np.testing.assert_array_equal(got, expect)

    print("KERNEL_OK")
</pallas_src>

<mosaic_0001>
module attributes {stable_mosaic.version = 11 : i64} {
  func.func @_scatter_mean_kernel(%arg0: i32, %arg1: i32, %arg2: memref<1x128xi32, #tpu.memory_space<vmem>>, %arg3: memref<128x128xbf16, #tpu.memory_space<vmem>>, %arg4: memref<128x128xf32, #tpu.memory_space<vmem>>, %arg5: memref<128x128xf32, #tpu.memory_space<vmem>>) attributes {dimension_semantics = [#tpu.dimension_semantics<parallel>, #tpu.dimension_semantics<arbitrary>], iteration_bounds = array<i64: 1, 1>, scalar_prefetch = 0 : i64, scratch_operands = 1 : i64, tpu.core_type = #tpu.core_type<tc>, window_params = [{transform_indices = @transform_0, window_bounds = array<i64: 1, 128>}, {transform_indices = @transform_1, window_bounds = array<i64: 128, 128>}, {transform_indices = @transform_2, window_bounds = array<i64: 128, 128>}]} {
    %c0_i32 = arith.constant 0 : i32
    %0 = arith.cmpi eq, %arg1, %c0_i32 : i32
    %1 = arith.extui %0 : i1 to i32
    %c0_i32_0 = arith.constant 0 : i32
    %2 = arith.cmpi ne, %1, %c0_i32_0 : i32
    scf.if %2 {
      %cst_10 = arith.constant 0.000000e+00 : f32
      %21 = vector.broadcast %cst_10 : f32 to vector<128x128xf32>
      %c0_11 = arith.constant 0 : index
      %c0_12 = arith.constant 0 : index
      %22 = vector.load %arg5[%c0_11, %c0_12] : memref<128x128xf32, #tpu.memory_space<vmem>>, vector<128x128xf32>
      tpu.vector_store %arg5[%c0_11, %c0_12], %21 {strides = array<i32>} : memref<128x128xf32, #tpu.memory_space<vmem>>, vector<128x128xf32>,
    } else {
    }
    %c128_i32 = arith.constant 128 : i32
    %3 = arith.muli %arg0, %c128_i32 : i32
    %4 = tpu.iota {dimensions = array<i32: 0>} : vector<128x128xi32>
    %5 = vector.broadcast %3 : i32 to vector<128x128xi32>
    %6 = arith.addi %4, %5 : vector<128x128xi32>
    %c0 = arith.constant 0 : index
    %c0_1 = arith.constant 0 : index
    %7 = vector.load %arg2[%c0, %c0_1] : memref<1x128xi32, #tpu.memory_space<vmem>>, vector<1x128xi32>
    %8 = vector.broadcast %7 : vector<1x128xi32> to vector<128x128xi32>
    %9 = arith.cmpi eq, %6, %8 : vector<128x128xi32>
    %10 = arith.extui %9 : vector<128x128xi1> to vector<128x128xi32>
    %11 = arith.sitofp %10 : vector<128x128xi32> to vector<128x128xf32>
    %12 = arith.truncf %11 : vector<128x128xf32> to vector<128x128xbf16>
    %c0_2 = arith.constant 0 : index
    %c0_3 = arith.constant 0 : index
    %13 = vector.load %arg5[%c0_2, %c0_3] : memref<128x128xf32, #tpu.memory_space<vmem>>, vector<128x128xf32>
    %c0_4 = arith.constant 0 : index
    %c0_5 = arith.constant 0 : index
    %14 = vector.load %arg3[%c0_4, %c0_5] : memref<128x128xbf16, #tpu.memory_space<vmem>>, vector<128x128xbf16>
    %cst = arith.constant dense<0.000000e+00> : vector<128x128xf32>
    %15 = tpu.matmul %12, %14, %cst {dimension_numbers = #tpu.dot_dimension_numbers<[1], [0], [0], [1], [0, 0, 1, 1], [], []>} : vector<128x128xbf16>, vector<128x128xbf16>, vector<128x128xf32> -> vector<128x128xf32>
    %16 = arith.addf %13, %15 : vector<128x128xf32>
    %c0_6 = arith.constant 0 : index
    %c0_7 = arith.constant 0 : index
    %17 = vector.load %arg5[%c0_6, %c0_7] : memref<128x128xf32, #tpu.memory_space<vmem>>, vector<128x128xf32>
    tpu.vector_store %arg5[%c0_6, %c0_7], %16 {strides = array<i32>} : memref<128x128xf32, #tpu.memory_space<vmem>>, vector<128x128xf32>,
    %c0_i32_8 = arith.constant 0 : i32
    %18 = arith.cmpi eq, %arg1, %c0_i32_8 : i32
    %19 = arith.extui %18 : i1 to i32
    %c0_i32_9 = arith.constant 0 : i32
    %20 = arith.cmpi ne, %19, %c0_i32_9 : i32
    scf.if %20 {
      %c0_10 = arith.constant 0 : index
      %c0_11 = arith.constant 0 : index
      %21 = vector.load %arg5[%c0_10, %c0_11] : memref<128x128xf32, #tpu.memory_space<vmem>>, vector<128x128xf32>
      %22 = vector.extract_strided_slice %21 {offsets = [0, 127], sizes = [128, 1], strides = [1, 1]} : vector<128x128xf32> to vector<128x1xf32>
      %cst_12 = arith.constant 1.000000e+00 : f32
      %23 = vector.broadcast %cst_12 : f32 to vector<128x1xf32>
      %24 = arith.addf %22, %23 : vector<128x1xf32>
      %25 = tpu.reciprocal %24 {approx = true} : vector<128x1xf32> -> vector<128x1xf32>
      %26 = vector.broadcast %25 : vector<128x1xf32> to vector<128x128xf32>
      %27 = arith.mulf %21, %26 : vector<128x128xf32>
      %c0_13 = arith.constant 0 : index
      %c0_14 = arith.constant 0 : index
      %28 = vector.load %arg4[%c0_13, %c0_14] : memref<128x128xf32, #tpu.memory_space<vmem>>, vector<128x128xf32>
      tpu.vector_store %arg4[%c0_13, %c0_14], %27 {strides = array<i32>} : memref<128x128xf32, #tpu.memory_space<vmem>>, vector<128x128xf32>,
    } else {
    }
    return
  }
  func.func @transform_0(%arg0: i32, %arg1: i32) -> (i32, i32) {
    %c0_i32 = arith.constant 0 : i32
    %c0_i32_0 = arith.constant 0 : i32
    return %c0_i32, %arg1 : i32, i32
  }
  func.func @transform_1(%arg0: i32, %arg1: i32) -> (i32, i32) {
    %c0_i32 = arith.constant 0 : i32
    %c0_i32_0 = arith.constant 0 : i32
    return %arg1, %c0_i32 : i32, i32
  }
  func.func @transform_2(%arg0: i32, %arg1: i32) -> (i32, i32) {
    %c0_i32 = arith.constant 0 : i32
    %c0_i32_0 = arith.constant 0 : i32
    return %arg0, %c0_i32 : i32, i32
  }
}

</mosaic_0001>

<llo_original>
// kernel: tpu_custom_call.1
$region0: #{tpu_custom_call.1}
  #allocation0 [shape = 'u32[]', space=smem, size = 0x4, offset = 0x4, fixed_abs, tag = 'smem constant byte address 0x4 - core index']
  #allocation1 [shape = 'u32[144,128]{1,0:T(1,128)}', space=vmem, size = 0x12000, scoped, tag = 'internal scratch']
  #allocation2 [shape = 'f32[128,128]{1,0:T(8,128)}', space=vmem, size = 0x10000, scoped, tag = 'scratch operand']
  %s0 = inlined_call_operand.hbm [shape: s32[1,128], index: 0, kind: input, shape index: {}]
  %s1 = inlined_call_operand.hbm [shape: bf16[128,128], index: 1, kind: input, shape index: {}]
  %s2 = inlined_call_operand.hbm [shape: f32[128,128], index: 2, kind: output, shape index: {}]
  %s3 = sld [smem:[#allocation0]]
  $region34: #{tpu_custom_call.1} parent=0
    _
  %s5 = ssub.s32 1, %s3
  %s6 = scalar_select 0, %s5, %s3
  $region1: #{tpu_custom_call.1} parent=0
    #allocation3 [shape = 'u8[512]{0}', space=vmem, size = 0x400, scoped, tag = 'input window, operand 0, single buffered']
    #allocation4 [shape = 's32[1]{0}', space=sflag, size = 0x4, scoped, tag = 'scoped memory for tpu_custom_call.1']
    #allocation5 [shape = 's32[1]{0}', space=sflag, size = 0x4, scoped, tag = 'scoped memory for tpu_custom_call.1']
    #allocation6 [shape = 'u8[32768]{0}', space=vmem, size = 0x8000, scoped, tag = 'input window, operand 1, single buffered']
    #allocation7 [shape = 's32[1]{0}', space=sflag, size = 0x4, scoped, tag = 'scoped memory for tpu_custom_call.1']
    #allocation8 [shape = 'u8[65536]{0}', space=vmem, size = 0x10000, scoped, tag = 'output window, operand 0, single buffered']
    %7 = vsyncpa [#allocation4], 0
    %8 = vsyncpa [#allocation7], 0
    %9 = vsyncpa [#allocation5], 0
    // Predicated region
    $region2: #{tpu_custom_call.1} parent=1 // pred_check
      _
    $region3: #{tpu_custom_call.1} parent=1 // pred_check_branch
      %11 = sbr.rel (0) target = $region5
    $region4: #{tpu_custom_call.1} parent=1 // pred_region
      %s13 = ssub.s32 16, 16
      %14 = vsyncadd [#allocation4], %s13
      %s16 = sshll.u32 [#allocation3], 4
      %s17 = int_to_ptr.vmem [resolvable:$true] %s16
      %19 = dma.hbm_to_vmem [thread:$0]  %s0, 16, %s17, [#allocation4]
    $region5: #{tpu_custom_call.1} parent=1 // pred_fallthru
      _
    // Predicated region
    $region6: #{tpu_custom_call.1} parent=1 // pred_check
      _
    $region7: #{tpu_custom_call.1} parent=1 // pred_check_branch
      %21 = sbr.rel (0) target = $region9
    $region8: #{tpu_custom_call.1} parent=1 // pred_region
      %s23 = ssub.s32 1024, 1024
      %24 = vsyncadd [#allocation7], %s23
      %s25 = sshll.u32 [#allocation6], 4
      %s26 = int_to_ptr.vmem [resolvable:$true] %s25
      %31 = dma.hbm_to_vmem [thread:$0]  %s1, 1024, %s26, [#allocation7], 64, 64, 4
    $region9: #{tpu_custom_call.1} parent=1 // pred_fallthru
      _
    // Predicated region
    $region10: #{tpu_custom_call.1} parent=1 // pred_check
      _
    $region11: #{tpu_custom_call.1} parent=1 // pred_check_branch
      %33 = sbr.rel (0) target = $region13
    $region12: #{tpu_custom_call.1} parent=1 // pred_region
      %34 = dma.done [#allocation4], 16
    $region13: #{tpu_custom_call.1} parent=1 // pred_fallthru
      _
    // Predicated region
    $region14: #{tpu_custom_call.1} parent=1 // pred_check
      _
    $region15: #{tpu_custom_call.1} parent=1 // pred_check_branch
      %36 = sbr.rel (0) target = $region17
    $region16: #{tpu_custom_call.1} parent=1 // pred_region
      %37 = dma.done [#allocation7], 1024
    $region17: #{tpu_custom_call.1} parent=1 // pred_fallthru
      _
    %p39 = scmp.eq.s32.totalorder 0, 0
    // Predicated region
    $region18: #{tpu_custom_call.1} parent=1 // pred_check
      %p40 = pneg %p39
    $region19: #{tpu_custom_call.1} parent=1 // pred_check_branch
      %42 = sbr.rel (%p40) target = $region21
    $region20: #{tpu_custom_call.1} parent=1 // pred_region
      %43 = vst [vmem:[#allocation2] sm:$0xff] 0.0
      %44 = vst [vmem:[#allocation2 + $0x8] sm:$0xff] 0.0
      %45 = vst [vmem:[#allocation2 + $0x10] sm:$0xff] 0.0
      %46 = vst [vmem:[#allocation2 + $0x18] sm:$0xff] 0.0
      %47 = vst [vmem:[#allocation2 + $0x20] sm:$0xff] 0.0
      %48 = vst [vmem:[#allocation2 + $0x28] sm:$0xff] 0.0
      %49 = vst [vmem:[#allocation2 + $0x30] sm:$0xff] 0.0
      %50 = vst [vmem:[#allocation2 + $0x38] sm:$0xff] 0.0
      %51 = vst [vmem:[#allocation2 + $0x40] sm:$0xff] 0.0
      %52 = vst [vmem:[#allocation2 + $0x48] sm:$0xff] 0.0
      %53 = vst [vmem:[#allocation2 + $0x50] sm:$0xff] 0.0
      %54 = vst [vmem:[#allocation2 + $0x58] sm:$0xff] 0.0
      %55 = vst [vmem:[#allocation2 + $0x60] sm:$0xff] 0.0
      %56 = vst [vmem:[#allocation2 + $0x68] sm:$0xff] 0.0
      %57 = vst [vmem:[#allocation2 + $0x70] sm:$0xff] 0.0
      %58 = vst [vmem:[#allocation2 + $0x78] sm:$0xff] 0.0
    $region21: #{tpu_custom_call.1} parent=1 // pred_fallthru
      _
    %s59 = smul.u32 0, 128
    %v60 = vlaneseq
    %v61 = vshrl.u32 %v60, 7
    %v62 = vadd.s32 %v61, 8
    %v63 = vadd.s32 %v61, 16
    %v64 = vadd.s32 %v61, 24
    %v65 = vadd.s32 %v61, 32
    %v66 = vadd.s32 %v61, 40
    %v67 = vadd.s32 %v61, 48
    %v68 = vadd.s32 %v61, 56
    %v69 = vadd.s32 %v61, 64
    %v70 = vadd.s32 %v61, 72
    %v71 = vadd.s32 %v61, 80
    %v72 = vadd.s32 %v61, 88
    %v73 = vadd.s32 %v61, 96
    %v74 = vadd.s32 %v61, 104
    %v75 = vadd.s32 %v61, 112
    %v76 = vadd.s32 %v61, 120
    %v77 = vstv %s59
    %v78 = vadd.s32 %v61, %v77
    %v79 = vadd.s32 %v62, %v77
    %v80 = vadd.s32 %v63, %v77
    %v81 = vadd.s32 %v64, %v77
    %v82 = vadd.s32 %v65, %v77
    %v83 = vadd.s32 %v66, %v77
    %v84 = vadd.s32 %v67, %v77
    %v85 = vadd.s32 %v68, %v77
    %v86 = vadd.s32 %v69, %v77
    %v87 = vadd.s32 %v70, %v77
    %v88 = vadd.s32 %v71, %v77
    %v89 = vadd.s32 %v72, %v77
    %v90 = vadd.s32 %v73, %v77
    %v91 = vadd.s32 %v74, %v77
    %v92 = vadd.s32 %v75, %v77
    %v93 = vadd.s32 %v76, %v77
    %v94 = vld [vmem:[#allocation3] sm:$0x1]
    %v95 = vlaneseq
    %v96 = vshrl.u32 %v95, 7
    %v97 = vsub.s32 0, %v96
    %v98 = vrot.slane %v94, %v97
    %vm99 = vcmp.eq.s32.totalorder %v78, %v98
    %vm100 = vcmp.eq.s32.totalorder %v79, %v98
    %vm101 = vcmp.eq.s32.totalorder %v80, %v98
    %vm102 = vcmp.eq.s32.totalorder %v81, %v98
    %vm103 = vcmp.eq.s32.totalorder %v82, %v98
    %vm104 = vcmp.eq.s32.totalorder %v83, %v98
    %vm105 = vcmp.eq.s32.totalorder %v84, %v98
    %vm106 = vcmp.eq.s32.totalorder %v85, %v98
    %vm107 = vcmp.eq.s32.totalorder %v86, %v98
    %vm108 = vcmp.eq.s32.totalorder %v87, %v98
    %vm109 = vcmp.eq.s32.totalorder %v88, %v98
    %vm110 = vcmp.eq.s32.totalorder %v89, %v98
    %vm111 = vcmp.eq.s32.totalorder %v90, %v98
    %vm112 = vcmp.eq.s32.totalorder %v91, %v98
    %vm113 = vcmp.eq.s32.totalorder %v92, %v98
    %vm114 = vcmp.eq.s32.totalorder %v93, %v98
    %v115 = vsel %vm99, 1, 0
    %v116 = vsel %vm100, 1, 0
    %v117 = vsel %vm101, 1, 0
    %v118 = vsel %vm102, 1, 0
    %v119 = vsel %vm103, 1, 0
    %v120 = vsel %vm104, 1, 0
    %v121 = vsel %vm105, 1, 0
    %v122 = vsel %vm106, 1, 0
    %v123 = vsel %vm107, 1, 0
    %v124 = vsel %vm108, 1, 0
    %v125 = vsel %vm109, 1, 0
    %v126 = vsel %vm110, 1, 0
    %v127 = vsel %vm111, 1, 0
    %v128 = vsel %vm112, 1, 0
    %v129 = vsel %vm113, 1, 0
    %v130 = vsel %vm114, 1, 0
    %v131 = vcvt.s32.f32 %v115
    %v132 = vcvt.s32.f32 %v116
    %v133 = vcvt.s32.f32 %v117
    %v134 = vcvt.s32.f32 %v118
    %v135 = vcvt.s32.f32 %v119
    %v136 = vcvt.s32.f32 %v120
    %v137 = vcvt.s32.f32 %v121
    %v138 = vcvt.s32.f32 %v122
    %v139 = vcvt.s32.f32 %v123
    %v140 = vcvt.s32.f32 %v124
    %v141 = vcvt.s32.f32 %v125
    %v142 = vcvt.s32.f32 %v126
    %v143 = vcvt.s32.f32 %v127
    %v144 = vcvt.s32.f32 %v128
    %v145 = vcvt.s32.f32 %v129
    %v146 = vcvt.s32.f32 %v130
    %v147 = vpack.c.bf16 %v132, %v131
    %v148 = vpack.c.bf16 %v134, %v133
    %v149 = vpack.c.bf16 %v136, %v135
    %v150 = vpack.c.bf16 %v138, %v137
    %v151 = vpack.c.bf16 %v140, %v139
    %v152 = vpack.c.bf16 %v142, %v141
    %v153 = vpack.c.bf16 %v144, %v143
    %v154 = vpack.c.bf16 %v146, %v145
    %v155 = vld [vmem:[#allocation2] sm:$0xff]
    %v156 = vld [vmem:[#allocation2 + $0x8] sm:$0xff]
    %v157 = vld [vmem:[#allocation2 + $0x10] sm:$0xff]
    %v158 = vld [vmem:[#allocation2 + $0x18] sm:$0xff]
    %v159 = vld [vmem:[#allocation2 + $0x20] sm:$0xff]
    %v160 = vld [vmem:[#allocation2 + $0x28] sm:$0xff]
    %v161 = vld [vmem:[#allocation2 + $0x30] sm:$0xff]
    %v162 = vld [vmem:[#allocation2 + $0x38] sm:$0xff]
    %v163 = vld [vmem:[#allocation2 + $0x40] sm:$0xff]
    %v164 = vld [vmem:[#allocation2 + $0x48] sm:$0xff]
    %v165 = vld [vmem:[#allocation2 + $0x50] sm:$0xff]
    %v166 = vld [vmem:[#allocation2 + $0x58] sm:$0xff]
    %v167 = vld [vmem:[#allocation2 + $0x60] sm:$0xff]
    %v168 = vld [vmem:[#allocation2 + $0x68] sm:$0xff]
    %v169 = vld [vmem:[#allocation2 + $0x70] sm:$0xff]
    %v170 = vld [vmem:[#allocation2 + $0x78] sm:$0xff]
    %v171 = vld [vmem:[#allocation6] sm:$0xf]
    %v172 = vld [vmem:[#allocation6 + $0x4] sm:$0xf]
    %v173 = vld [vmem:[#allocation6 + $0x8] sm:$0xf]
    %v174 = vld [vmem:[#allocation6 + $0xc] sm:$0xf]
    %v175 = vld [vmem:[#allocation6 + $0x10] sm:$0xf]
    %v176 = vld [vmem:[#allocation6 + $0x14] sm:$0xf]
    %v177 = vld [vmem:[#allocation6 + $0x18] sm:$0xf]
    %v178 = vld [vmem:[#allocation6 + $0x1c] sm:$0xf]
    %v179 = vld [vmem:[#allocation6 + $0x20] sm:$0xf]
    %v180 = vld [vmem:[#allocation6 + $0x24] sm:$0xf]
    %v181 = vld [vmem:[#allocation6 + $0x28] sm:$0xf]
    %v182 = vld [vmem:[#allocation6 + $0x2c] sm:$0xf]
    %v183 = vld [vmem:[#allocation6 + $0x30] sm:$0xf]
    %v184 = vld [vmem:[#allocation6 + $0x34] sm:$0xf]
    %v185 = vld [vmem:[#allocation6 + $0x38] sm:$0xf]
    %v186 = vld [vmem:[#allocation6 + $0x3c] sm:$0xf]
    %v203 = vunpack.c.l.b16 %v171
    %v204 = vunpack.c.l.b16 %v172
    %v205 = vunpack.c.l.b16 %v173
    %v206 = vunpack.c.l.b16 %v174
    %v207 = vunpack.c.l.b16 %v175
    %v208 = vunpack.c.l.b16 %v176
    %v209 = vunpack.c.l.b16 %v177
    %v210 = vunpack.c.l.b16 %v178
    %v211 = vunpack.c.l.b16 %v179
    %v212 = vunpack.c.l.b16 %v180
    %v213 = vunpack.c.l.b16 %v181
    %v214 = vunpack.c.l.b16 %v182
    %v215 = vunpack.c.l.b16 %v183
    %v216 = vunpack.c.l.b16 %v184
    %v217 = vunpack.c.l.b16 %v185
    %v218 = vunpack.c.l.b16 %v186
    %v219 = vpack.c.b16 %v204, %v203
    %v220 = vpack.c.b16 %v206, %v205
    %v221 = vpack.c.b16 %v208, %v207
    %v222 = vpack.c.b16 %v210, %v209
    %v223 = vpack.c.b16 %v212, %v211
    %v224 = vpack.c.b16 %v214, %v213
    %v225 = vpack.c.b16 %v216, %v215
    %v226 = vpack.c.b16 %v218, %v217
    %235 = vmatprep.subr.bf16.mxu0 0
    %236 = vmatpush1.bf16.msra.mxu0 %v219
    %237 = vmatprep.subr.bf16.mxu0 0
    %238 = vmatpush1.bf16.msra.mxu0 %v220
    %239 = vmatprep.subr.bf16.mxu0 0
    %240 = vmatpush1.bf16.msra.mxu0 %v221
    %241 = vmatprep.subr.bf16.mxu0 0
    %242 = vmatpush1.bf16.msra.mxu0 %v222
    %243 = vmatprep.subr.bf16.mxu0 0
    %244 = vmatpush1.bf16.msra.mxu0 %v223
    %245 = vmatprep.subr.bf16.mxu0 0
    %246 = vmatpush1.bf16.msra.mxu0 %v224
    %247 = vmatprep.subr.bf16.mxu0 0
    %248 = vmatpush1.bf16.msra.mxu0 %v225
    %249 = vmatprep.subr.bf16.mxu0 0
    %250 = vmatpush1.bf16.msra.mxu0 %v226
    %251 = vmatprep.subr.bf16.mxu0 0
    %252 = vmatpush1.bf16.msra.mxu0 0
    %253 = vmatprep.subr.bf16.mxu0 0
    %254 = vmatpush1.bf16.msra.mxu0 0
    %255 = vmatprep.subr.bf16.mxu0 0
    %256 = vmatpush1.bf16.msra.mxu0 0
    %257 = vmatprep.subr.bf16.mxu0 0
    %258 = vmatpush1.bf16.msra.mxu0 0
    %259 = vmatprep.subr.bf16.mxu0 0
    %260 = vmatpush1.bf16.msra.mxu0 0
    %261 = vmatprep.subr.bf16.mxu0 0
    %262 = vmatpush1.bf16.msra.mxu0 0
    %263 = vmatprep.subr.bf16.mxu0 0
    %264 = vmatpush1.bf16.msra.mxu0 0
    %265 = vmatprep.subr.bf16.mxu0 0
    %266 = vmatpush1.bf16.msra.mxu0 0
    %267 = vmatprep.mubr.bf16.mxu0 0
    %268 = vmatmul.mubr.bf16.gmra.mrb[0].mxu0 %v147
    %v269 = vpop.f32.mrb[0].mxu0
    %v270 = vadd.f32 0.0, %v269
    %v271 = vpop.f32.mrb[0].mxu0
    %v272 = vpop.f32.mrb[0].mxu0
    %v273 = vadd.f32 0.0, %v272
    %v274 = vpop.f32.mrb[0].mxu0
    %275 = vmatprep.mubr.bf16.mxu0 0
    %276 = vmatmul.mubr.bf16.gmra.mrb[0].mxu0 %v148
    %v277 = vpop.f32.mrb[0].mxu0
    %v278 = vadd.f32 0.0, %v277
    %v279 = vpop.f32.mrb[0].mxu0
    %v280 = vpop.f32.mrb[0].mxu0
    %v281 = vadd.f32 0.0, %v280
    %v282 = vpop.f32.mrb[0].mxu0
    %283 = vmatprep.mubr.bf16.mxu0 0
    %284 = vmatmul.mubr.bf16.gmra.mrb[0].mxu0 %v149
    %v285 = vpop.f32.mrb[0].mxu0
    %v286 = vadd.f32 0.0, %v285
    %v287 = vpop.f32.mrb[0].mxu0
    %v288 = vpop.f32.mrb[0].mxu0
    %v289 = vadd.f32 0.0, %v288
    %v290 = vpop.f32.mrb[0].mxu0
    %291 = vmatprep.mubr.bf16.mxu0 0
    %292 = vmatmul.mubr.bf16.gmra.mrb[0].mxu0 %v150
    %v293 = vpop.f32.mrb[0].mxu0
    %v294 = vadd.f32 0.0, %v293
    %v295 = vpop.f32.mrb[0].mxu0
    %v296 = vpop.f32.mrb[0].mxu0
    %v297 = vadd.f32 0.0, %v296
    %v298 = vpop.f32.mrb[0].mxu0
    %299 = vmatprep.mubr.bf16.mxu0 0
    %300 = vmatmul.mubr.bf16.gmra.mrb[0].mxu0 %v151
    %v301 = vpop.f32.mrb[0].mxu0
    %v302 = vadd.f32 0.0, %v301
    %v303 = vpop.f32.mrb[0].mxu0
    %v304 = vpop.f32.mrb[0].mxu0
    %v305 = vadd.f32 0.0, %v304
    %v306 = vpop.f32.mrb[0].mxu0
    %307 = vmatprep.mubr.bf16.mxu0 0
    %308 = vmatmul.mubr.bf16.gmra.mrb[0].mxu0 %v152
    %v309 = vpop.f32.mrb[0].mxu0
    %v310 = vadd.f32 0.0, %v309
    %v311 = vpop.f32.mrb[0].mxu0
    %v312 = vpop.f32.mrb[0].mxu0
    %v313 = vadd.f32 0.0, %v312
    %v314 = vpop.f32.mrb[0].mxu0
    %315 = vmatprep.mubr.bf16.mxu0 0
    %316 = vmatmul.mubr.bf16.gmra.mrb[0].mxu0 %v153
    %v317 = vpop.f32.mrb[0].mxu0
    %v318 = vadd.f32 0.0, %v317
    %v319 = vpop.f32.mrb[0].mxu0
    %v320 = vpop.f32.mrb[0].mxu0
    %v321 = vadd.f32 0.0, %v320
    %v322 = vpop.f32.mrb[0].mxu0
    %323 = vmatprep.mubr.bf16.mxu0 0
    %324 = vmatmul.mubr.bf16.gmra.mrb[0].mxu0 %v154
    %v325 = vpop.f32.mrb[0].mxu0
    %v326 = vadd.f32 0.0, %v325
    %v327 = vpop.f32.mrb[0].mxu0
    %v328 = vpop.f32.mrb[0].mxu0
    %v329 = vadd.f32 0.0, %v328
    %v330 = vpop.f32.mrb[0].mxu0
    %331 = vdwg.mxu0
    %v332 = vadd.f32 %v155, %v270
    %v333 = vadd.f32 %v156, %v273
    %v334 = vadd.f32 %v157, %v278
    %v335 = vadd.f32 %v158, %v281
    %v336 = vadd.f32 %v159, %v286
    %v337 = vadd.f32 %v160, %v289
    %v338 = vadd.f32 %v161, %v294
    %v339 = vadd.f32 %v162, %v297
    %v340 = vadd.f32 %v163, %v302
    %v341 = vadd.f32 %v164, %v305
    %v342 = vadd.f32 %v165, %v310
    %v343 = vadd.f32 %v166, %v313
    %v344 = vadd.f32 %v167, %v318
    %v345 = vadd.f32 %v168, %v321
    %v346 = vadd.f32 %v169, %v326
    %v347 = vadd.f32 %v170, %v329
    %348 = vst [vmem:[#allocation2] sm:$0xff] %v332
    %349 = vst [vmem:[#allocation2 + $0x8] sm:$0xff] %v333
    %350 = vst [vmem:[#allocation2 + $0x10] sm:$0xff] %v334
    %351 = vst [vmem:[#allocation2 + $0x18] sm:$0xff] %v335
    %352 = vst [vmem:[#allocation2 + $0x20] sm:$0xff] %v336
    %353 = vst [vmem:[#allocation2 + $0x28] sm:$0xff] %v337
    %354 = vst [vmem:[#allocation2 + $0x30] sm:$0xff] %v338
    %355 = vst [vmem:[#allocation2 + $0x38] sm:$0xff] %v339
    %356 = vst [vmem:[#allocation2 + $0x40] sm:$0xff] %v340
    %357 = vst [vmem:[#allocation2 + $0x48] sm:$0xff] %v341
    %358 = vst [vmem:[#allocation2 + $0x50] sm:$0xff] %v342
    %359 = vst [vmem:[#allocation2 + $0x58] sm:$0xff] %v343
    %360 = vst [vmem:[#allocation2 + $0x60] sm:$0xff] %v344
    %361 = vst [vmem:[#allocation2 + $0x68] sm:$0xff] %v345
    %362 = vst [vmem:[#allocation2 + $0x70] sm:$0xff] %v346
    %363 = vst [vmem:[#allocation2 + $0x78] sm:$0xff] %v347
    // Predicated region
    $region22: #{tpu_custom_call.1} parent=1 // pred_check
      %p364 = pneg %p39
    $region23: #{tpu_custom_call.1} parent=1 // pred_check_branch
      %366 = sbr.rel (%p364) target = $region25
    $region24: #{tpu_custom_call.1} parent=1 // pred_region
      %v367 = vld [vmem:[#allocation2] sm:$0xff]
      %v368 = vld [vmem:[#allocation2 + $0x8] sm:$0xff]
      %v369 = vld [vmem:[#allocation2 + $0x10] sm:$0xff]
      %v370 = vld [vmem:[#allocation2 + $0x18] sm:$0xff]
      %v371 = vld [vmem:[#allocation2 + $0x20] sm:$0xff]
      %v372 = vld [vmem:[#allocation2 + $0x28] sm:$0xff]
      %v373 = vld [vmem:[#allocation2 + $0x30] sm:$0xff]
      %v374 = vld [vmem:[#allocation2 + $0x38] sm:$0xff]
      %v375 = vld [vmem:[#allocation2 + $0x40] sm:$0xff]
      %v376 = vld [vmem:[#allocation2 + $0x48] sm:$0xff]
      %v377 = vld [vmem:[#allocation2 + $0x50] sm:$0xff]
      %v378 = vld [vmem:[#allocation2 + $0x58] sm:$0xff]
      %v379 = vld [vmem:[#allocation2 + $0x60] sm:$0xff]
      %v380 = vld [vmem:[#allocation2 + $0x68] sm:$0xff]
      %v381 = vld [vmem:[#allocation2 + $0x70] sm:$0xff]
      %v382 = vld [vmem:[#allocation2 + $0x78] sm:$0xff]
      %v383 = vadd.f32 %v367, 1.0
      %v384 = vadd.f32 %v368, 1.0
      %v385 = vadd.f32 %v369, 1.0
      %v386 = vadd.f32 %v370, 1.0
      %v387 = vadd.f32 %v371, 1.0
      %v388 = vadd.f32 %v372, 1.0
      %v389 = vadd.f32 %v373, 1.0
      %v390 = vadd.f32 %v374, 1.0
      %v391 = vadd.f32 %v375, 1.0
      %v392 = vadd.f32 %v376, 1.0
      %v393 = vadd.f32 %v377, 1.0
      %v394 = vadd.f32 %v378, 1.0
      %v395 = vadd.f32 %v379, 1.0
      %v396 = vadd.f32 %v380, 1.0
      %v397 = vadd.f32 %v381, 1.0
      %v398 = vadd.f32 %v382, 1.0
      %v399 = vrcp.pop %v383
      %v400 = vrcp.pop %v384
      %v401 = vrcp.pop %v385
      %v402 = vrcp.pop %v386
      %v403 = vrcp.pop %v387
      %v404 = vrcp.pop %v388
      %v405 = vrcp.pop %v389
      %v406 = vrcp.pop %v390
      %v407 = vrcp.pop %v391
      %v408 = vrcp.pop %v392
      %v409 = vrcp.pop %v393
      %v410 = vrcp.pop %v394
      %v411 = vrcp.pop %v395
      %v412 = vrcp.pop %v396
      %v413 = vrcp.pop %v397
      %v414 = vrcp.pop %v398
      %416 = vset.pattern.permute.xlu0 127
      %417 = vperm.xlu0 %416, %v399
      %v418 = vpop.permute.xlu0 %417
      %421 = vset.pattern.permute.xlu0 127
      %422 = vperm.xlu0 %421, %v400
      %v423 = vpop.permute.xlu0 %422
      %426 = vset.pattern.permute.xlu0 127
      %427 = vperm.xlu0 %426, %v401
      %v428 = vpop.permute.xlu0 %427
      %431 = vset.pattern.permute.xlu0 127
      %432 = vperm.xlu0 %431, %v402
      %v433 = vpop.permute.xlu0 %432
      %436 = vset.pattern.permute.xlu0 127
      %437 = vperm.xlu0 %436, %v403
      %v438 = vpop.permute.xlu0 %437
      %441 = vset.pattern.permute.xlu0 127
      %442 = vperm.xlu0 %441, %v404
      %v443 = vpop.permute.xlu0 %442
      %446 = vset.pattern.permute.xlu0 127
      %447 = vperm.xlu0 %446, %v405
      %v448 = vpop.permute.xlu0 %447
      %451 = vset.pattern.permute.xlu0 127
      %452 = vperm.xlu0 %451, %v406
      %v453 = vpop.permute.xlu0 %452
      %456 = vset.pattern.permute.xlu0 127
      %457 = vperm.xlu0 %456, %v407
      %v458 = vpop.permute.xlu0 %457
      %461 = vset.pattern.permute.xlu0 127
      %462 = vperm.xlu0 %461, %v408
      %v463 = vpop.permute.xlu0 %462
      %466 = vset.pattern.permute.xlu0 127
      %467 = vperm.xlu0 %466, %v409
      %v468 = vpop.permute.xlu0 %467
      %471 = vset.pattern.permute.xlu0 127
      %472 = vperm.xlu0 %471, %v410
      %v473 = vpop.permute.xlu0 %472
      %476 = vset.pattern.permute.xlu0 127
      %477 = vperm.xlu0 %476, %v411
      %v478 = vpop.permute.xlu0 %477
      %481 = vset.pattern.permute.xlu0 127
      %482 = vperm.xlu0 %481, %v412
      %v483 = vpop.permute.xlu0 %482
      %486 = vset.pattern.permute.xlu0 127
      %487 = vperm.xlu0 %486, %v413
      %v488 = vpop.permute.xlu0 %487
      %491 = vset.pattern.permute.xlu0 127
      %492 = vperm.xlu0 %491, %v414
      %v493 = vpop.permute.xlu0 %492
      %v495 = vmul.f32 %v367, %v418
      %v496 = vmul.f32 %v368, %v423
      %v497 = vmul.f32 %v369, %v428
      %v498 = vmul.f32 %v370, %v433
      %v499 = vmul.f32 %v371, %v438
      %v500 = vmul.f32 %v372, %v443
      %v501 = vmul.f32 %v373, %v448
      %v502 = vmul.f32 %v374, %v453
      %v503 = vmul.f32 %v375, %v458
      %v504 = vmul.f32 %v376, %v463
      %v505 = vmul.f32 %v377, %v468
      %v506 = vmul.f32 %v378, %v473
      %v507 = vmul.f32 %v379, %v478
      %v508 = vmul.f32 %v380, %v483
      %v509 = vmul.f32 %v381, %v488
      %v510 = vmul.f32 %v382, %v493
      %511 = vst [vmem:[#allocation8] sm:$0xff] %v495
      %512 = vst [vmem:[#allocation8 + $0x8] sm:$0xff] %v496
      %513 = vst [vmem:[#allocation8 + $0x10] sm:$0xff] %v497
      %514 = vst [vmem:[#allocation8 + $0x18] sm:$0xff] %v498
      %515 = vst [vmem:[#allocation8 + $0x20] sm:$0xff] %v499
      %516 = vst [vmem:[#allocation8 + $0x28] sm:$0xff] %v500
      %517 = vst [vmem:[#allocation8 + $0x30] sm:$0xff] %v501
      %518 = vst [vmem:[#allocation8 + $0x38] sm:$0xff] %v502
      %519 = vst [vmem:[#allocation8 + $0x40] sm:$0xff] %v503
      %520 = vst [vmem:[#allocation8 + $0x48] sm:$0xff] %v504
      %521 = vst [vmem:[#allocation8 + $0x50] sm:$0xff] %v505
      %522 = vst [vmem:[#allocation8 + $0x58] sm:$0xff] %v506
      %523 = vst [vmem:[#allocation8 + $0x60] sm:$0xff] %v507
      %524 = vst [vmem:[#allocation8 + $0x68] sm:$0xff] %v508
      %525 = vst [vmem:[#allocation8 + $0x70] sm:$0xff] %v509
      %526 = vst [vmem:[#allocation8 + $0x78] sm:$0xff] %v510
    $region25: #{tpu_custom_call.1} parent=1 // pred_fallthru
      _
    // Predicated region
    $region26: #{tpu_custom_call.1} parent=1 // pred_check
      _
    $region27: #{tpu_custom_call.1} parent=1 // pred_check_branch
      %528 = sbr.rel (0) target = $region29
    $region28: #{tpu_custom_call.1} parent=1 // pred_region
      %s530 = ssub.s32 2048, 2048
      %531 = vsyncadd [#allocation5], %s530
      %s532 = sshll.u32 [#allocation8], 4
      %s533 = int_to_ptr.vmem [resolvable:$true] %s532
      %538 = dma.vmem_to_hbm [thread:$0]  %s533, 2048, %s2, [#allocation5], 128, 128, 8
    $region29: #{tpu_custom_call.1} parent=1 // pred_fallthru
      _
    // Predicated region
    $region30: #{tpu_custom_call.1} parent=1 // pred_check
      _
    $region31: #{tpu_custom_call.1} parent=1 // pred_check_branch
      %540 = sbr.rel (0) target = $region33
    $region32: #{tpu_custom_call.1} parent=1 // pred_region
      %541 = dma.done [#allocation5], 2048
    $region33: #{tpu_custom_call.1} parent=1 // pred_fallthru
      _
    %542 = vsyncpa [#allocation4], 1
    %543 = vsyncpa [#allocation7], 1
    %544 = vsyncpa [#allocation5], 1

</llo_original>
